<compile_context>
chip_gen: v6e
topology: v6e:2x2x1
jax: 0.10.0
libtpu: 0.0.40
codegen_flags: <defaults>
</compile_context>

<pallas_src>
import math

import jax
import jax.numpy as jnp
from jax.experimental import pallas as pl
from jax.experimental.pallas import tpu as pltpu

# ---- static configuration (small, consistent with the module) -------------------
WORD_VEC = 32
HIDDEN = 32
OUTPUT = 48
LAYERS = 2
BATCH = 4
SRC_LEN = 8
INPUT_FEED = True
ATTN_MODEL = "none"

LANES = 128
GATES = 4 * HIDDEN                      # 128 -> exactly one lane width

# fused weight-slab row offsets (all multiples of 8 -> (8,128)-tile aligned slices)
_L0_IN = WORD_VEC + HIDDEN + HIDDEN     # [x | ctx | h0]  = 96 rows
_L1_IN = HIDDEN + HIDDEN                # [h0_new | h1]   = 64 rows
W0_OFF = 0
W1_OFF = W0_OFF + _L0_IN                # 96
WOUT_OFF = W1_OFF + _L1_IN              # 160
BIAS_OFF = WOUT_OFF + HIDDEN            # 192  (rows 192..199: b0, b1, bout, zeros)
SLAB_ROWS = BIAS_OFF + 8                # 200


# ---- Pallas kernel: 2-layer LSTM step + output Linear ----------------------------
def _decoder_kernel(x_ref, ctx_ref, h_ref, c_ref, w_ref, out_ref):
    H = HIDDEN
    x = x_ref[0]                     # (B, WORD_VEC) -- single time step (seq == 1)
    ctx = ctx_ref[...]               # (B, H)
    h0, h1 = h_ref[0], h_ref[1]      # (B, H)
    c0, c1 = c_ref[0], c_ref[1]      # (B, H)

    b0 = w_ref[BIAS_OFF + 0:BIAS_OFF + 1, :]      # (1, 128)
    b1 = w_ref[BIAS_OFF + 1:BIAS_OFF + 2, :]      # (1, 128)
    bout = w_ref[BIAS_OFF + 2:BIAS_OFF + 3, :]    # (1, 128) (cols >= OUTPUT are zero)

    def lstm_step(lhs, w, b, c_prev):
        # one fused matmul for all gates, PyTorch gate order i, f, g, o
        gates = jnp.dot(lhs, w, preferred_element_type=jnp.float32) + b   # (B, 4H)
        sig = jax.nn.sigmoid(gates)          # full-vreg activation (i, f, o live here)
        tnh = jnp.tanh(gates)                # full-vreg activation (g lives here)
        i_g = sig[:, 0 * H:1 * H]
        f_g = sig[:, 1 * H:2 * H]
        g_g = tnh[:, 2 * H:3 * H]
        o_g = sig[:, 3 * H:4 * H]
        c_new = f_g * c_prev + i_g * g_g
        h_new = o_g * jnp.tanh(c_new)
        return h_new, c_new

    # layer 0: LHS = [x | ctx | h0]  @  [W_x; W_ctx; W_hh0]
    lhs0 = jnp.concatenate([x, ctx, h0], axis=-1)                     # (B, 96)
    h0n, c0n = lstm_step(lhs0, w_ref[W0_OFF:W1_OFF, :], b0, c0)

    # layer 1: LHS = [h0_new | h1]   @  [W_ih1; W_hh1]
    # (inter-layer rnn_dropout == identity in eval)
    lhs1 = jnp.concatenate([h0n, h1], axis=-1)                        # (B, 64)
    h1n, c1n = lstm_step(lhs1, w_ref[W1_OFF:WOUT_OFF, :], b1, c1)

    # out = Linear(hidden, output), lane-padded to 128; attn_dropout == identity in eval
    dec = jnp.dot(h1n, w_ref[WOUT_OFF:BIAS_OFF, :],
                  preferred_element_type=jnp.float32) + bout          # (B, 128)

    # pack everything into one lane-dense (2B, 128) slab -> single unmasked store
    hc = jnp.concatenate([h0n, h1n, c0n, c1n], axis=-1)               # (B, 128)
    out_ref[...] = jnp.concatenate([dec, hc], axis=0)                 # (2B, 128)


# ---- parameter construction (deterministic, PyTorch-style init) ------------------
def init_params(key):
    ks = jax.random.split(key, 10)
    k_lstm = 1.0 / math.sqrt(HIDDEN)
    k_lin = 1.0 / math.sqrt(HIDDEN)
    rnn_in = WORD_VEC + HIDDEN if INPUT_FEED else WORD_VEC
    u = lambda k, shape, bound: jax.random.uniform(
        k, shape, jnp.float32, minval=-bound, maxval=bound)
    return {
        # layer 0: input size rnn_in
        "w_ih0": u(ks[0], (GATES, rnn_in), k_lstm),
        "w_hh0": u(ks[1], (GATES, HIDDEN), k_lstm),
        "b_ih0": u(ks[2], (GATES,), k_lstm),
        "b_hh0": u(ks[3], (GATES,), k_lstm),
        # layer 1: input size HIDDEN
        "w_ih1": u(ks[4], (GATES, HIDDEN), k_lstm),
        "w_hh1": u(ks[5], (GATES, HIDDEN), k_lstm),
        "b_ih1": u(ks[6], (GATES,), k_lstm),
        "b_hh1": u(ks[7], (GATES,), k_lstm),
        # out = nn.Linear(hidden, output)
        "w_out": u(ks[8], (OUTPUT, HIDDEN), k_lin),
        "b_out": u(ks[9], (OUTPUT,), k_lin),
    }


def prepare_params(params):
    """One-time weight layout (hoisted out of the per-step forward):
    fused [W_ih; W_hh] per layer, b_ih+b_hh fold, lane padding, single slab."""
    w0 = jnp.concatenate([params["w_ih0"].T, params["w_hh0"].T], axis=0)   # (96, 128)
    w1 = jnp.concatenate([params["w_ih1"].T, params["w_hh1"].T], axis=0)   # (64, 128)
    wout = jnp.pad(params["w_out"].T, ((0, 0), (0, LANES - OUTPUT)))       # (32, 128)
    b0 = params["b_ih0"] + params["b_hh0"]                                 # (128,)
    b1 = params["b_ih1"] + params["b_hh1"]                                 # (128,)
    bout = jnp.pad(params["b_out"], (0, LANES - OUTPUT))                   # (128,)
    bias_block = jnp.zeros((8, LANES), jnp.float32)
    bias_block = bias_block.at[0].set(b0).at[1].set(b1).at[2].set(bout)
    slab = jnp.concatenate([w0, w1, wout, bias_block], axis=0)             # (200, 128)
    assert slab.shape == (SLAB_ROWS, LANES)
    return slab


# ---- wrapper: single pallas_call, unpack the output slab -------------------------
@jax.jit
def decoder_forward(input_step, context_vector, last_hidden, encoder_cell,
                    encoder_outputs, weight_slab):
    del encoder_outputs  # unused when attn_model == 'none'
    out_slab = pl.pallas_call(
        _decoder_kernel,
        out_shape=jax.ShapeDtypeStruct((2 * BATCH, LANES), jnp.float32),
        in_specs=[pl.BlockSpec(memory_space=pltpu.MemorySpace.VMEM)] * 5,
        out_specs=pl.BlockSpec(memory_space=pltpu.MemorySpace.VMEM),
    )(input_step, context_vector, last_hidden, encoder_cell, weight_slab)

    H = HIDDEN
    dec = out_slab[:BATCH, :OUTPUT]                                    # (B, O)
    hc = out_slab[BATCH:, :]                                           # (B, 4H)
    h_new = jnp.stack([hc[:, 0 * H:1 * H], hc[:, 1 * H:2 * H]], axis=0)  # (2, B, H)
    c_new = jnp.stack([hc[:, 2 * H:3 * H], hc[:, 3 * H:4 * H]], axis=0)  # (2, B, H)

    # attn_model == 'none' branch: reproduce the PyTorch code verbatim, which uses
    # input_step.shape[-1] (the word-vec dim) as "batch_size" for the zeros tensor.
    attention_output = jnp.zeros((input_step.shape[-1], HIDDEN), jnp.float32)
    return dec, attention_output, h_new, c_new


# ---- pure-JAX reference (for a loose correctness sanity check) -------------------
def reference_forward(input_step, context_vector, last_hidden, encoder_cell, params):
    x = jnp.concatenate([input_step[0], context_vector], axis=-1)
    layer_keys = (("w_ih0", "w_hh0", "b_ih0", "b_hh0"),
                  ("w_ih1", "w_hh1", "b_ih1", "b_hh1"))
    hs, cs = [], []
    inp = x
    for l, (wi, wh, bi, bh) in enumerate(layer_keys):
        gates = inp @ params[wi].T + last_hidden[l] @ params[wh].T + params[bi] + params[bh]
        i_g = jax.nn.sigmoid(gates[:, 0 * HIDDEN:1 * HIDDEN])
        f_g = jax.nn.sigmoid(gates[:, 1 * HIDDEN:2 * HIDDEN])
        g_g = jnp.tanh(gates[:, 2 * HIDDEN:3 * HIDDEN])
        o_g = jax.nn.sigmoid(gates[:, 3 * HIDDEN:4 * HIDDEN])
        c_new = f_g * encoder_cell[l] + i_g * g_g
        h_new = o_g * jnp.tanh(c_new)
        hs.append(h_new)
        cs.append(c_new)
        inp = h_new
    dec = inp @ params["w_out"].T + params["b_out"]
    return dec, jnp.stack(hs), jnp.stack(cs)


if __name__ == "__main__":
    key = jax.random.PRNGKey(0)
    k_p, k_x, k_ctx, k_h, k_c, k_enc = jax.random.split(key, 6)

    params = init_params(k_p)
    weight_slab = prepare_params(params)   # one-time layout; reused every decode step

    input_step = jax.random.normal(k_x, (1, BATCH, WORD_VEC), jnp.float32)
    context_vector = jax.random.normal(k_ctx, (BATCH, HIDDEN), jnp.float32)
    last_hidden = jax.random.normal(k_h, (LAYERS, BATCH, HIDDEN), jnp.float32)
    encoder_cell = jax.random.normal(k_c, (LAYERS, BATCH, HIDDEN), jnp.float32)
    encoder_outputs = jax.random.normal(k_enc, (SRC_LEN, BATCH, HIDDEN), jnp.float32)

    dec_out, attn_out, hidden, cell = decoder_forward(
        input_step, context_vector, last_hidden, encoder_cell,
        encoder_outputs, weight_slab)
    jax.block_until_ready((dec_out, attn_out, hidden, cell))

    assert dec_out.shape == (BATCH, OUTPUT)
    assert attn_out.shape == (WORD_VEC, HIDDEN)
    assert hidden.shape == (LAYERS, BATCH, HIDDEN)
    assert cell.shape == (LAYERS, BATCH, HIDDEN)

    ref_dec, ref_h, ref_c = reference_forward(
        input_step, context_vector, last_hidden, encoder_cell, params)
    assert jnp.allclose(dec_out, ref_dec, atol=2e-2, rtol=2e-2)
    assert jnp.allclose(hidden, ref_h, atol=2e-2, rtol=2e-2)
    assert jnp.allclose(cell, ref_c, atol=2e-2, rtol=2e-2)

    print("KERNEL_OK")
</pallas_src>

<mosaic_0001>
module attributes {stable_mosaic.version = 11 : i64} {
  func.func @_decoder_kernel(%arg0: memref<1x4x32xf32, #tpu.memory_space<vmem>>, %arg1: memref<4x32xf32, #tpu.memory_space<vmem>>, %arg2: memref<2x4x32xf32, #tpu.memory_space<vmem>>, %arg3: memref<2x4x32xf32, #tpu.memory_space<vmem>>, %arg4: memref<200x128xf32, #tpu.memory_space<vmem>>, %arg5: memref<8x128xf32, #tpu.memory_space<vmem>>) attributes {dimension_semantics = [], scalar_prefetch = 0 : i64, scratch_operands = 0 : i64, tpu.core_type = #tpu.core_type<tc>} {
    %c0 = arith.constant 0 : index
    %c0_0 = arith.constant 0 : index
    %c0_1 = arith.constant 0 : index
    %0 = vector.load %arg0[%c0, %c0_0, %c0_1] : memref<1x4x32xf32, #tpu.memory_space<vmem>>, vector<1x4x32xf32>
    %1 = vector.shape_cast %0 : vector<1x4x32xf32> to vector<4x32xf32>
    %c0_2 = arith.constant 0 : index
    %c0_3 = arith.constant 0 : index
    %2 = vector.load %arg1[%c0_2, %c0_3] : memref<4x32xf32, #tpu.memory_space<vmem>>, vector<4x32xf32>
    %c0_4 = arith.constant 0 : index
    %c0_5 = arith.constant 0 : index
    %c0_6 = arith.constant 0 : index
    %3 = vector.load %arg2[%c0_4, %c0_5, %c0_6] : memref<2x4x32xf32, #tpu.memory_space<vmem>>, vector<1x4x32xf32>
    %4 = vector.shape_cast %3 : vector<1x4x32xf32> to vector<4x32xf32>
    %c1 = arith.constant 1 : index
    %c0_7 = arith.constant 0 : index
    %c0_8 = arith.constant 0 : index
    %5 = vector.load %arg2[%c1, %c0_7, %c0_8] : memref<2x4x32xf32, #tpu.memory_space<vmem>>, vector<1x4x32xf32>
    %6 = vector.shape_cast %5 : vector<1x4x32xf32> to vector<4x32xf32>
    %c0_9 = arith.constant 0 : index
    %c0_10 = arith.constant 0 : index
    %c0_11 = arith.constant 0 : index
    %7 = vector.load %arg3[%c0_9, %c0_10, %c0_11] : memref<2x4x32xf32, #tpu.memory_space<vmem>>, vector<1x4x32xf32>
    %8 = vector.shape_cast %7 : vector<1x4x32xf32> to vector<4x32xf32>
    %c1_12 = arith.constant 1 : index
    %c0_13 = arith.constant 0 : index
    %c0_14 = arith.constant 0 : index
    %9 = vector.load %arg3[%c1_12, %c0_13, %c0_14] : memref<2x4x32xf32, #tpu.memory_space<vmem>>, vector<1x4x32xf32>
    %10 = vector.shape_cast %9 : vector<1x4x32xf32> to vector<4x32xf32>
    %c192 = arith.constant 192 : index
    %c0_15 = arith.constant 0 : index
    %11 = vector.load %arg4[%c192, %c0_15] : memref<200x128xf32, #tpu.memory_space<vmem>>, vector<1x128xf32>
    %c193 = arith.constant 193 : index
    %c0_16 = arith.constant 0 : index
    %12 = vector.load %arg4[%c193, %c0_16] : memref<200x128xf32, #tpu.memory_space<vmem>>, vector<1x128xf32>
    %c194 = arith.constant 194 : index
    %c0_17 = arith.constant 0 : index
    %13 = vector.load %arg4[%c194, %c0_17] : memref<200x128xf32, #tpu.memory_space<vmem>>, vector<1x128xf32>
    %14 = tpu.concatenate %1, %2, %4 in 1 : vector<4x32xf32>, vector<4x32xf32>, vector<4x32xf32> -> vector<4x96xf32>
    %c0_18 = arith.constant 0 : index
    %c0_19 = arith.constant 0 : index
    %15 = vector.load %arg4[%c0_18, %c0_19] : memref<200x128xf32, #tpu.memory_space<vmem>>, vector<96x128xf32>
    %cst = arith.constant dense<0.000000e+00> : vector<4x128xf32>
    %16 = tpu.matmul %14, %15, %cst {dimension_numbers = #tpu.dot_dimension_numbers<[1], [0], [0], [1], [0, 0, 1, 1], [], []>} : vector<4x96xf32>, vector<96x128xf32>, vector<4x128xf32> -> vector<4x128xf32>
    %17 = vector.broadcast %11 : vector<1x128xf32> to vector<4x128xf32>
    %18 = arith.addf %16, %17 : vector<4x128xf32>
    %19 = arith.negf %18 : vector<4x128xf32>
    %20 = math.exp %19 : vector<4x128xf32>
    %cst_20 = arith.constant 1.000000e+00 : f32
    %21 = vector.broadcast %cst_20 : f32 to vector<4x128xf32>
    %22 = arith.addf %21, %20 : vector<4x128xf32>
    %23 = arith.divf %21, %22 : vector<4x128xf32>
    %24 = math.tanh %18 : vector<4x128xf32>
    %25 = vector.extract_strided_slice %23 {offsets = [0, 0], sizes = [4, 32], strides = [1, 1]} : vector<4x128xf32> to vector<4x32xf32>
    %26 = vector.extract_strided_slice %23 {offsets = [0, 32], sizes = [4, 32], strides = [1, 1]} : vector<4x128xf32> to vector<4x32xf32>
    %27 = vector.extract_strided_slice %24 {offsets = [0, 64], sizes = [4, 32], strides = [1, 1]} : vector<4x128xf32> to vector<4x32xf32>
    %28 = vector.extract_strided_slice %23 {offsets = [0, 96], sizes = [4, 32], strides = [1, 1]} : vector<4x128xf32> to vector<4x32xf32>
    %29 = arith.mulf %26, %8 : vector<4x32xf32>
    %30 = arith.mulf %25, %27 : vector<4x32xf32>
    %31 = arith.addf %29, %30 : vector<4x32xf32>
    %32 = math.tanh %31 : vector<4x32xf32>
    %33 = arith.mulf %28, %32 : vector<4x32xf32>
    %34 = tpu.concatenate %33, %6 in 1 : vector<4x32xf32>, vector<4x32xf32> -> vector<4x64xf32>
    %c96 = arith.constant 96 : index
    %c0_21 = arith.constant 0 : index
    %35 = vector.load %arg4[%c96, %c0_21] : memref<200x128xf32, #tpu.memory_space<vmem>>, vector<64x128xf32>
    %cst_22 = arith.constant dense<0.000000e+00> : vector<4x128xf32>
    %36 = tpu.matmul %34, %35, %cst_22 {dimension_numbers = #tpu.dot_dimension_numbers<[1], [0], [0], [1], [0, 0, 1, 1], [], []>} : vector<4x64xf32>, vector<64x128xf32>, vector<4x128xf32> -> vector<4x128xf32>
    %37 = vector.broadcast %12 : vector<1x128xf32> to vector<4x128xf32>
    %38 = arith.addf %36, %37 : vector<4x128xf32>
    %39 = arith.negf %38 : vector<4x128xf32>
    %40 = math.exp %39 : vector<4x128xf32>
    %cst_23 = arith.constant 1.000000e+00 : f32
    %41 = vector.broadcast %cst_23 : f32 to vector<4x128xf32>
    %42 = arith.addf %41, %40 : vector<4x128xf32>
    %43 = arith.divf %41, %42 : vector<4x128xf32>
    %44 = math.tanh %38 : vector<4x128xf32>
    %45 = vector.extract_strided_slice %43 {offsets = [0, 0], sizes = [4, 32], strides = [1, 1]} : vector<4x128xf32> to vector<4x32xf32>
    %46 = vector.extract_strided_slice %43 {offsets = [0, 32], sizes = [4, 32], strides = [1, 1]} : vector<4x128xf32> to vector<4x32xf32>
    %47 = vector.extract_strided_slice %44 {offsets = [0, 64], sizes = [4, 32], strides = [1, 1]} : vector<4x128xf32> to vector<4x32xf32>
    %48 = vector.extract_strided_slice %43 {offsets = [0, 96], sizes = [4, 32], strides = [1, 1]} : vector<4x128xf32> to vector<4x32xf32>
    %49 = arith.mulf %46, %10 : vector<4x32xf32>
    %50 = arith.mulf %45, %47 : vector<4x32xf32>
    %51 = arith.addf %49, %50 : vector<4x32xf32>
    %52 = math.tanh %51 : vector<4x32xf32>
    %53 = arith.mulf %48, %52 : vector<4x32xf32>
    %c160 = arith.constant 160 : index
    %c0_24 = arith.constant 0 : index
    %54 = vector.load %arg4[%c160, %c0_24] : memref<200x128xf32, #tpu.memory_space<vmem>>, vector<32x128xf32>
    %cst_25 = arith.constant dense<0.000000e+00> : vector<4x128xf32>
    %55 = tpu.matmul %53, %54, %cst_25 {dimension_numbers = #tpu.dot_dimension_numbers<[1], [0], [0], [1], [0, 0, 1, 1], [], []>} : vector<4x32xf32>, vector<32x128xf32>, vector<4x128xf32> -> vector<4x128xf32>
    %56 = vector.broadcast %13 : vector<1x128xf32> to vector<4x128xf32>
    %57 = arith.addf %55, %56 : vector<4x128xf32>
    %58 = tpu.concatenate %33, %53, %31, %51 in 1 : vector<4x32xf32>, vector<4x32xf32>, vector<4x32xf32>, vector<4x32xf32> -> vector<4x128xf32>
    %59 = tpu.concatenate %57, %58 in 0 : vector<4x128xf32>, vector<4x128xf32> -> vector<8x128xf32>
    %c0_26 = arith.constant 0 : index
    %c0_27 = arith.constant 0 : index
    %60 = vector.load %arg5[%c0_26, %c0_27] : memref<8x128xf32, #tpu.memory_space<vmem>>, vector<8x128xf32>
    tpu.vector_store %arg5[%c0_26, %c0_27], %59 {strides = array<i32>} : memref<8x128xf32, #tpu.memory_space<vmem>>, vector<8x128xf32>,
    return
  }
}

</mosaic_0001>

<llo_original>
// kernel: decoder_forward.1
$region0: #{decoder_forward.1}
  #allocation0 [shape = 'u32[]', space=smem, size = 0x4, offset = 0x4, fixed_abs, tag = 'smem constant byte address 0x4 - core index']
  #allocation1 [shape = 'u32[144,128]{1,0:T(1,128)}', space=vmem, size = 0x12000, scoped, tag = 'internal scratch']
  %s0 = inlined_call_operand.hbm [shape: f32[1,4,32], index: 0, kind: input, shape index: {}]
  %s1 = inlined_call_operand.hbm [shape: f32[4,32], index: 1, kind: input, shape index: {}]
  %s2 = inlined_call_operand.hbm [shape: f32[2,4,32], index: 2, kind: input, shape index: {}]
  %s3 = inlined_call_operand.hbm [shape: f32[2,4,32], index: 3, kind: input, shape index: {}]
  %s4 = inlined_call_operand.hbm [shape: f32[200,128], index: 4, kind: input, shape index: {}]
  %s5 = inlined_call_operand.vmem [shape: f32[8,128], index: 5, kind: output, shape index: {}]
  %s6 = sld [smem:[#allocation0]]
  $region50: #{decoder_forward.1} parent=0
    _
  %s8 = ssub.s32 1, %s6
  %s9 = scalar_select 0, %s8, %s6
  $region1: #{decoder_forward.1} parent=0
    #allocation2 [shape = 'u8[2048]{0}', space=vmem, size = 0x800, scoped, tag = 'input window, operand 0, single buffered']
    #allocation3 [shape = 's32[1]{0}', space=sflag, size = 0x4, scoped, tag = 'scoped memory for decoder_forward.1']
    #allocation4 [shape = 'u8[2048]{0}', space=vmem, size = 0x800, scoped, tag = 'input window, operand 1, single buffered']
    #allocation5 [shape = 's32[1]{0}', space=sflag, size = 0x4, scoped, tag = 'scoped memory for decoder_forward.1']
    #allocation6 [shape = 'u8[4096]{0}', space=vmem, size = 0x1000, scoped, tag = 'input window, operand 2, single buffered']
    #allocation7 [shape = 'u8[4096]{0}', space=vmem, size = 0x1000, scoped, tag = 'input window, operand 3, single buffered']
    #allocation8 [shape = 's32[1]{0}', space=sflag, size = 0x4, scoped, tag = 'scoped memory for decoder_forward.1']
    #allocation9 [shape = 'u8[102400]{0}', space=vmem, size = 0x19000, scoped, tag = 'input window, operand 4, single buffered']
    %10 = vsyncpa [#allocation3], 0
    %11 = vsyncpa [#allocation5], 0
    %12 = vsyncpa [#allocation8], 0
    // Predicated region
    $region2: #{decoder_forward.1} parent=1 // pred_check
      _
    $region3: #{decoder_forward.1} parent=1 // pred_check_branch
      %14 = sbr.rel (0) target = $region5
    $region4: #{decoder_forward.1} parent=1 // pred_region
      %s16 = ssub.s32 64, 64
      %17 = vsyncadd [#allocation3], %s16
      %s19 = sshll.u32 [#allocation2], 4
      %s20 = int_to_ptr.vmem [resolvable:$true] %s19
      %22 = dma.hbm_to_vmem [thread:$0]  %s0, 64, %s20, [#allocation3]
    $region5: #{decoder_forward.1} parent=1 // pred_fallthru
      _
    // Predicated region
    $region6: #{decoder_forward.1} parent=1 // pred_check
      _
    $region7: #{decoder_forward.1} parent=1 // pred_check_branch
      %24 = sbr.rel (0) target = $region9
    $region8: #{decoder_forward.1} parent=1 // pred_region
      %s26 = ssub.s32 64, 64
      %27 = vsyncadd [#allocation5], %s26
      %s29 = sshll.u32 [#allocation4], 4
      %s30 = int_to_ptr.vmem [resolvable:$true] %s29
      %32 = dma.hbm_to_vmem [thread:$0]  %s1, 64, %s30, [#allocation5]
    $region9: #{decoder_forward.1} parent=1 // pred_fallthru
      _
    // Predicated region
    $region10: #{decoder_forward.1} parent=1 // pred_check
      _
    $region11: #{decoder_forward.1} parent=1 // pred_check_branch
      %34 = sbr.rel (0) target = $region13
    $region12: #{decoder_forward.1} parent=1 // pred_region
      %s36 = ssub.s32 128, 128
      %37 = vsyncadd [#allocation5], %s36
      %s38 = sshll.u32 [#allocation6], 4
      %s39 = int_to_ptr.vmem [resolvable:$true] %s38
      %44 = dma.hbm_to_vmem [thread:$0]  %s2, 128, %s39, [#allocation5], 64, 64, 4
    $region13: #{decoder_forward.1} parent=1 // pred_fallthru
      _
    // Predicated region
    $region14: #{decoder_forward.1} parent=1 // pred_check
      _
    $region15: #{decoder_forward.1} parent=1 // pred_check_branch
      %46 = sbr.rel (0) target = $region17
    $region16: #{decoder_forward.1} parent=1 // pred_region
      %s48 = ssub.s32 128, 128
      %49 = vsyncadd [#allocation8], %s48
      %s50 = sshll.u32 [#allocation7], 4
      %s51 = int_to_ptr.vmem [resolvable:$true] %s50
      %56 = dma.hbm_to_vmem [thread:$0]  %s3, 128, %s51, [#allocation8], 64, 64, 4
    $region17: #{decoder_forward.1} parent=1 // pred_fallthru
      _
    // Predicated region
    $region18: #{decoder_forward.1} parent=1 // pred_check
      _
    $region19: #{decoder_forward.1} parent=1 // pred_check_branch
      %58 = sbr.rel (0) target = $region21
    $region20: #{decoder_forward.1} parent=1 // pred_region
      %s60 = ssub.s32 3200, 3200
      %61 = vsyncadd [#allocation8], %s60
      %s62 = sshll.u32 [#allocation9], 4
      %s63 = int_to_ptr.vmem [resolvable:$true] %s62
      %68 = dma.hbm_to_vmem [thread:$0]  %s4, 3200, %s63, [#allocation8], 128, 128, 8
    $region21: #{decoder_forward.1} parent=1 // pred_fallthru
      _
    // Predicated region
    $region22: #{decoder_forward.1} parent=1 // pred_check
      _
    $region23: #{decoder_forward.1} parent=1 // pred_check_branch
      %70 = sbr.rel (0) target = $region25
    $region24: #{decoder_forward.1} parent=1 // pred_region
      %71 = dma.done [#allocation3], 64
    $region25: #{decoder_forward.1} parent=1 // pred_fallthru
      _
    // Predicated region
    $region26: #{decoder_forward.1} parent=1 // pred_check
      _
    $region27: #{decoder_forward.1} parent=1 // pred_check_branch
      %73 = sbr.rel (0) target = $region29
    $region28: #{decoder_forward.1} parent=1 // pred_region
      %74 = dma.done [#allocation5], 64
    $region29: #{decoder_forward.1} parent=1 // pred_fallthru
      _
    // Predicated region
    $region30: #{decoder_forward.1} parent=1 // pred_check
      _
    $region31: #{decoder_forward.1} parent=1 // pred_check_branch
      %76 = sbr.rel (0) target = $region33
    $region32: #{decoder_forward.1} parent=1 // pred_region
      %77 = dma.done [#allocation5], 128
    $region33: #{decoder_forward.1} parent=1 // pred_fallthru
      _
    // Predicated region
    $region34: #{decoder_forward.1} parent=1 // pred_check
      _
    $region35: #{decoder_forward.1} parent=1 // pred_check_branch
      %79 = sbr.rel (0) target = $region37
    $region36: #{decoder_forward.1} parent=1 // pred_region
      %80 = dma.done [#allocation8], 128
    $region37: #{decoder_forward.1} parent=1 // pred_fallthru
      _
    // Predicated region
    $region38: #{decoder_forward.1} parent=1 // pred_check
      _
    $region39: #{decoder_forward.1} parent=1 // pred_check_branch
      %82 = sbr.rel (0) target = $region41
    $region40: #{decoder_forward.1} parent=1 // pred_region
      %83 = dma.done [#allocation8], 3200
    $region41: #{decoder_forward.1} parent=1 // pred_fallthru
      _
    %v84 = vld [vmem:[#allocation2] sm:$0xf]
    %v85 = vld [vmem:[#allocation4] sm:$0xf]
    %v86 = vld [vmem:[#allocation6] sm:$0xf]
    %s87 = scalar_lea.vmem [#allocation6], 4
    %v88 = vld [vmem:[%s87] sm:$0xf]
    %v89 = vld [vmem:[#allocation7] sm:$0xf]
    %s90 = scalar_lea.vmem [#allocation7], 4
    %v91 = vld [vmem:[%s90] sm:$0xf]
    %v92 = vld [vmem:[#allocation9 + $0xc0] sm:$0x1]
    %v93 = vld [vmem:[#allocation9 + $0xc1] sm:$0x1]
    %v94 = vld [vmem:[#allocation9 + $0xc2] sm:$0x1]
    %96 = vrot.lane.b32.xlu0 %v85, 32
    %v97 = vpop.permute.xlu0 %96
    %100 = vrot.lane.b32.xlu0 %v86, 64
    %v101 = vpop.permute.xlu0 %100
    %vm103 = vcmask 261120
    %v104 = vsel %vm103, %v84, %v97
    %vm105 = vcmask 523264
    %v106 = vsel %vm105, %v104, %v101
    %v107 = vld [vmem:[#allocation9] sm:$0xff]
    %v108 = vld [vmem:[#allocation9 + $0x8] sm:$0xff]
    %v109 = vld [vmem:[#allocation9 + $0x10] sm:$0xff]
    %v110 = vld [vmem:[#allocation9 + $0x18] sm:$0xff]
    %v111 = vld [vmem:[#allocation9 + $0x20] sm:$0xff]
    %v112 = vld [vmem:[#allocation9 + $0x28] sm:$0xff]
    %v113 = vld [vmem:[#allocation9 + $0x30] sm:$0xff]
    %v114 = vld [vmem:[#allocation9 + $0x38] sm:$0xff]
    %v115 = vld [vmem:[#allocation9 + $0x40] sm:$0xff]
    %v116 = vld [vmem:[#allocation9 + $0x48] sm:$0xff]
    %v117 = vld [vmem:[#allocation9 + $0x50] sm:$0xff]
    %v118 = vld [vmem:[#allocation9 + $0x58] sm:$0xff]
    %v119 = vlaneseq
    %v120 = vshrl.u32 %v119, 7
    %v121 = vsub.s32 0, %v120
    %v122 = vrot.slane %v92, %v121
    %vm123 = vcmask 785408
    %v125 = vsel %vm123, %v106, 0
    %127 = vmatprep.subr.mxu0 0.0
    %128 = vmatpush1.msra.mxu0 0.0
    %129 = vmatprep.subr.mxu0 0.0
    %130 = vmatpush1.msra.mxu0 0.0
    %131 = vmatprep.subr.mxu0 0.0
    %132 = vmatpush1.msra.mxu0 0.0
    %133 = vmatprep.subr.mxu0 0.0
    %134 = vmatpush1.msra.mxu0 0.0
    %135 = vmatprep.subr.mxu0 0.0
    %136 = vmatpush1.msra.mxu0 %v118
    %137 = vmatprep.subr.mxu0 0.0
    %138 = vmatpush1.msra.mxu0 %v117
    %139 = vmatprep.subr.mxu0 0.0
    %140 = vmatpush1.msra.mxu0 %v116
    %141 = vmatprep.subr.mxu0 0.0
    %142 = vmatpush1.msra.mxu0 %v115
    %143 = vmatprep.subr.mxu0 0.0
    %144 = vmatpush1.msra.mxu0 %v114
    %145 = vmatprep.subr.mxu0 0.0
    %146 = vmatpush1.msra.mxu0 %v113
    %147 = vmatprep.subr.mxu0 0.0
    %148 = vmatpush1.msra.mxu0 %v112
    %149 = vmatprep.subr.mxu0 0.0
    %150 = vmatpush1.msra.mxu0 %v111
    %151 = vmatprep.subr.mxu0 0.0
    %152 = vmatpush1.msra.mxu0 %v110
    %153 = vmatprep.subr.mxu0 0.0
    %154 = vmatpush1.msra.mxu0 %v109
    %155 = vmatprep.subr.mxu0 0.0
    %156 = vmatpush1.msra.mxu0 %v108
    %157 = vmatprep.subr.mxu0 0.0
    %158 = vmatpush1.msra.mxu0 %v107
    %159 = vmatprep.subr.mxu0 0.0
    %160 = vmatpush2.msra.mxu0 0.0
    %161 = vmatprep.subr.mxu0 0.0
    %162 = vmatpush2.msra.mxu0 0.0
    %163 = vmatprep.subr.mxu0 0.0
    %164 = vmatpush2.msra.mxu0 0.0
    %165 = vmatprep.subr.mxu0 0.0
    %166 = vmatpush2.msra.mxu0 0.0
    %167 = vmatprep.subr.mxu0 0.0
    %168 = vmatpush2.msra.mxu0 0.0
    %169 = vmatprep.subr.mxu0 0.0
    %170 = vmatpush2.msra.mxu0 0.0
    %171 = vmatprep.subr.mxu0 0.0
    %172 = vmatpush2.msra.mxu0 0.0
    %173 = vmatprep.subr.mxu0 0.0
    %174 = vmatpush2.msra.mxu0 0.0
    %175 = vmatprep.subr.mxu0 0.0
    %176 = vmatpush2.msra.mxu0 0.0
    %177 = vmatprep.subr.mxu0 0.0
    %178 = vmatpush2.msra.mxu0 0.0
    %179 = vmatprep.subr.mxu0 0.0
    %180 = vmatpush2.msra.mxu0 0.0
    %181 = vmatprep.subr.mxu0 0.0
    %182 = vmatpush2.msra.mxu0 0.0
    %183 = vmatprep.subr.mxu0 0.0
    %184 = vmatpush2.msra.mxu0 0.0
    %185 = vmatprep.subr.mxu0 0.0
    %186 = vmatpush2.msra.mxu0 0.0
    %187 = vmatprep.subr.mxu0 0.0
    %188 = vmatpush2.msra.mxu0 0.0
    %189 = vmatprep.subr.mxu0 0.0
    %190 = vmatpush2.msra.mxu0 0.0
    %191 = vmatprep.mubr.f32.mxu0 0.0
    %192 = vmatmul.mubr.f32.gmra.mxu0 %v125
    %v193 = vpop.f32.mrf.mxu0
    %v194 = vadd.f32 %v122, %v193
    %v195 = vpop.f32.mrf.mxu0
    %196 = vdwg.mxu0
    %v197 = vxor.u32 %v194, 2147483648
    %v198 = vmul.f32 %v197, 1.442695
    %v199 = vpow.pop %v198
    %v200 = vadd.f32 %v199, 1.0
    %v201 = vrcp.pop %v200
    %v202 = vmul.f32 1.0, %v201
    %v203 = vtanh.pop %v194
    %205 = vrot.lane.b32.xlu0 %v89, 32
    %v206 = vpop.permute.xlu0 %205
    %v208 = vmul.f32 %v202, %v206
    %210 = vrot.lane.b32.xlu0 %v203, 64
    %v211 = vpop.permute.xlu0 %210
    %v213 = vmul.f32 %v202, %v211
    %215 = vrot.lane.b32.xlu0 %v213, 32
    %v216 = vpop.permute.xlu0 %215
    %v218 = vadd.f32 %v208, %v216
    %v219 = vtanh.pop %v218
    %221 = vrot.lane.b32.xlu0 %v219, 64
    %v222 = vpop.permute.xlu0 %221
    %v224 = vmul.f32 %v202, %v222
    %226 = vrot.lane.b32.xlu0 %v224, 32
    %v227 = vpop.permute.xlu0 %226
    %230 = vrot.lane.b32.xlu0 %v88, 32
    %v231 = vpop.permute.xlu0 %230
    %v233 = vsel %vm103, %v227, %v231
    %v234 = vld [vmem:[#allocation9 + $0x60] sm:$0xff]
    %v235 = vld [vmem:[#allocation9 + $0x68] sm:$0xff]
    %v236 = vld [vmem:[#allocation9 + $0x70] sm:$0xff]
    %v237 = vld [vmem:[#allocation9 + $0x78] sm:$0xff]
    %v238 = vld [vmem:[#allocation9 + $0x80] sm:$0xff]
    %v239 = vld [vmem:[#allocation9 + $0x88] sm:$0xff]
    %v240 = vld [vmem:[#allocation9 + $0x90] sm:$0xff]
    %v241 = vld [vmem:[#allocation9 + $0x98] sm:$0xff]
    %v242 = vlaneseq
    %v243 = vshrl.u32 %v242, 7
    %v244 = vsub.s32 0, %v243
    %v245 = vrot.slane %v93, %v244
    %v247 = vsel %vm105, %v233, 0
    %249 = vmatprep.subr.mxu0 0.0
    %250 = vmatpush1.msra.mxu0 0.0
    %251 = vmatprep.subr.mxu0 0.0
    %252 = vmatpush1.msra.mxu0 0.0
    %253 = vmatprep.subr.mxu0 0.0
    %254 = vmatpush1.msra.mxu0 0.0
    %255 = vmatprep.subr.mxu0 0.0
    %256 = vmatpush1.msra.mxu0 0.0
    %257 = vmatprep.subr.mxu0 0.0
    %258 = vmatpush1.msra.mxu0 0.0
    %259 = vmatprep.subr.mxu0 0.0
    %260 = vmatpush1.msra.mxu0 0.0
    %261 = vmatprep.subr.mxu0 0.0
    %262 = vmatpush1.msra.mxu0 0.0
    %263 = vmatprep.subr.mxu0 0.0
    %264 = vmatpush1.msra.mxu0 0.0
    %265 = vmatprep.subr.mxu0 0.0
    %266 = vmatpush1.msra.mxu0 %v241
    %267 = vmatprep.subr.mxu0 0.0
    %268 = vmatpush1.msra.mxu0 %v240
    %269 = vmatprep.subr.mxu0 0.0
    %270 = vmatpush1.msra.mxu0 %v239
    %271 = vmatprep.subr.mxu0 0.0
    %272 = vmatpush1.msra.mxu0 %v238
    %273 = vmatprep.subr.mxu0 0.0
    %274 = vmatpush1.msra.mxu0 %v237
    %275 = vmatprep.subr.mxu0 0.0
    %276 = vmatpush1.msra.mxu0 %v236
    %277 = vmatprep.subr.mxu0 0.0
    %278 = vmatpush1.msra.mxu0 %v235
    %279 = vmatprep.subr.mxu0 0.0
    %280 = vmatpush1.msra.mxu0 %v234
    %281 = vmatprep.subr.mxu0 0.0
    %282 = vmatpush2.msra.mxu0 0.0
    %283 = vmatprep.subr.mxu0 0.0
    %284 = vmatpush2.msra.mxu0 0.0
    %285 = vmatprep.subr.mxu0 0.0
    %286 = vmatpush2.msra.mxu0 0.0
    %287 = vmatprep.subr.mxu0 0.0
    %288 = vmatpush2.msra.mxu0 0.0
    %289 = vmatprep.subr.mxu0 0.0
    %290 = vmatpush2.msra.mxu0 0.0
    %291 = vmatprep.subr.mxu0 0.0
    %292 = vmatpush2.msra.mxu0 0.0
    %293 = vmatprep.subr.mxu0 0.0
    %294 = vmatpush2.msra.mxu0 0.0
    %295 = vmatprep.subr.mxu0 0.0
    %296 = vmatpush2.msra.mxu0 0.0
    %297 = vmatprep.subr.mxu0 0.0
    %298 = vmatpush2.msra.mxu0 0.0
    %299 = vmatprep.subr.mxu0 0.0
    %300 = vmatpush2.msra.mxu0 0.0
    %301 = vmatprep.subr.mxu0 0.0
    %302 = vmatpush2.msra.mxu0 0.0
    %303 = vmatprep.subr.mxu0 0.0
    %304 = vmatpush2.msra.mxu0 0.0
    %305 = vmatprep.subr.mxu0 0.0
    %306 = vmatpush2.msra.mxu0 0.0
    %307 = vmatprep.subr.mxu0 0.0
    %308 = vmatpush2.msra.mxu0 0.0
    %309 = vmatprep.subr.mxu0 0.0
    %310 = vmatpush2.msra.mxu0 0.0
    %311 = vmatprep.subr.mxu0 0.0
    %312 = vmatpush2.msra.mxu0 0.0
    %313 = vmatprep.mubr.f32.mxu0 0.0
    %314 = vmatmul.mubr.f32.gmra.mxu0 %v247
    %v315 = vpop.f32.mrf.mxu0
    %v316 = vadd.f32 %v245, %v315
    %v317 = vpop.f32.mrf.mxu0
    %318 = vdwg.mxu0
    %v319 = vxor.u32 %v316, 2147483648
    %v320 = vmul.f32 %v319, 1.442695
    %v321 = vpow.pop %v320
    %v322 = vadd.f32 %v321, 1.0
    %v323 = vrcp.pop %v322
    %v324 = vmul.f32 1.0, %v323
    %v325 = vtanh.pop %v316
    %327 = vrot.lane.b32.xlu0 %v91, 32
    %v328 = vpop.permute.xlu0 %327
    %v330 = vmul.f32 %v324, %v328
    %332 = vrot.lane.b32.xlu0 %v325, 64
    %v333 = vpop.permute.xlu0 %332
    %v335 = vmul.f32 %v324, %v333
    %337 = vrot.lane.b32.xlu0 %v335, 32
    %v338 = vpop.permute.xlu0 %337
    %v340 = vadd.f32 %v330, %v338
    %v341 = vtanh.pop %v340
    %343 = vrot.lane.b32.xlu0 %v341, 64
    %v344 = vpop.permute.xlu0 %343
    %v346 = vmul.f32 %v324, %v344
    %v347 = vld [vmem:[#allocation9 + $0xa0] sm:$0xff]
    %v348 = vld [vmem:[#allocation9 + $0xa8] sm:$0xff]
    %v349 = vld [vmem:[#allocation9 + $0xb0] sm:$0xff]
    %v350 = vld [vmem:[#allocation9 + $0xb8] sm:$0xff]
    %v351 = vlaneseq
    %v352 = vshrl.u32 %v351, 7
    %v353 = vsub.s32 0, %v352
    %v354 = vrot.slane %v94, %v353
    %356 = vrot.lane.b32.xlu0 %v346, 32
    %v357 = vpop.permute.xlu0 %356
    %v358 = vsel %vm103, %v357, 0
    %360 = vmatprep.subr.mxu0 0.0
    %361 = vmatpush1.msra.mxu0 0.0
    %362 = vmatprep.subr.mxu0 0.0
    %363 = vmatpush1.msra.mxu0 0.0
    %364 = vmatprep.subr.mxu0 0.0
    %365 = vmatpush1.msra.mxu0 0.0
    %366 = vmatprep.subr.mxu0 0.0
    %367 = vmatpush1.msra.mxu0 0.0
    %368 = vmatprep.subr.mxu0 0.0
    %369 = vmatpush1.msra.mxu0 0.0
    %370 = vmatprep.subr.mxu0 0.0
    %371 = vmatpush1.msra.mxu0 0.0
    %372 = vmatprep.subr.mxu0 0.0
    %373 = vmatpush1.msra.mxu0 0.0
    %374 = vmatprep.subr.mxu0 0.0
    %375 = vmatpush1.msra.mxu0 0.0
    %376 = vmatprep.subr.mxu0 0.0
    %377 = vmatpush1.msra.mxu0 0.0
    %378 = vmatprep.subr.mxu0 0.0
    %379 = vmatpush1.msra.mxu0 0.0
    %380 = vmatprep.subr.mxu0 0.0
    %381 = vmatpush1.msra.mxu0 0.0
    %382 = vmatprep.subr.mxu0 0.0
    %383 = vmatpush1.msra.mxu0 0.0
    %384 = vmatprep.subr.mxu0 0.0
    %385 = vmatpush1.msra.mxu0 %v350
    %386 = vmatprep.subr.mxu0 0.0
    %387 = vmatpush1.msra.mxu0 %v349
    %388 = vmatprep.subr.mxu0 0.0
    %389 = vmatpush1.msra.mxu0 %v348
    %390 = vmatprep.subr.mxu0 0.0
    %391 = vmatpush1.msra.mxu0 %v347
    %392 = vmatprep.subr.mxu0 0.0
    %393 = vmatpush2.msra.mxu0 0.0
    %394 = vmatprep.subr.mxu0 0.0
    %395 = vmatpush2.msra.mxu0 0.0
    %396 = vmatprep.subr.mxu0 0.0
    %397 = vmatpush2.msra.mxu0 0.0
    %398 = vmatprep.subr.mxu0 0.0
    %399 = vmatpush2.msra.mxu0 0.0
    %400 = vmatprep.subr.mxu0 0.0
    %401 = vmatpush2.msra.mxu0 0.0
    %402 = vmatprep.subr.mxu0 0.0
    %403 = vmatpush2.msra.mxu0 0.0
    %404 = vmatprep.subr.mxu0 0.0
    %405 = vmatpush2.msra.mxu0 0.0
    %406 = vmatprep.subr.mxu0 0.0
    %407 = vmatpush2.msra.mxu0 0.0
    %408 = vmatprep.subr.mxu0 0.0
    %409 = vmatpush2.msra.mxu0 0.0
    %410 = vmatprep.subr.mxu0 0.0
    %411 = vmatpush2.msra.mxu0 0.0
    %412 = vmatprep.subr.mxu0 0.0
    %413 = vmatpush2.msra.mxu0 0.0
    %414 = vmatprep.subr.mxu0 0.0
    %415 = vmatpush2.msra.mxu0 0.0
    %416 = vmatprep.subr.mxu0 0.0
    %417 = vmatpush2.msra.mxu0 0.0
    %418 = vmatprep.subr.mxu0 0.0
    %419 = vmatpush2.msra.mxu0 0.0
    %420 = vmatprep.subr.mxu0 0.0
    %421 = vmatpush2.msra.mxu0 0.0
    %422 = vmatprep.subr.mxu0 0.0
    %423 = vmatpush2.msra.mxu0 0.0
    %424 = vmatprep.mubr.f32.mxu0 0.0
    %425 = vmatmul.mubr.f32.gmra.mxu0 %v358
    %v426 = vpop.f32.mrf.mxu0
    %v427 = vadd.f32 %v354, %v426
    %v428 = vpop.f32.mrf.mxu0
    %429 = vdwg.mxu0
    %430 = vrot.lane.b32.xlu0 %v346, 64
    %v431 = vpop.permute.xlu0 %430
    %434 = vrot.lane.b32.xlu0 %v218, 32
    %v435 = vpop.permute.xlu0 %434
    %438 = vrot.lane.b32.xlu0 %v340, 64
    %v439 = vpop.permute.xlu0 %438
    %v441 = vsel %vm103, %v227, %v431
    %v442 = vsel %vm105, %v441, %v435
    %v443 = vsel %vm123, %v442, %v439
    %v445 = vrot.slane %v443, 4
    %vm447 = vcmask 1043456
    %v448 = vsel %vm447, %v427, %v445
    %449 = vst [vmem:[%s5] sm:$0xff] %v448
    // Predicated region
    $region42: #{decoder_forward.1} parent=1 // pred_check
      _
    $region43: #{decoder_forward.1} parent=1 // pred_check_branch
      %451 = sbr.rel (0) target = $region45
    $region44: #{decoder_forward.1} parent=1 // pred_region
      _
    $region45: #{decoder_forward.1} parent=1 // pred_fallthru
      _
    // Predicated region
    $region46: #{decoder_forward.1} parent=1 // pred_check
      _
    $region47: #{decoder_forward.1} parent=1 // pred_check_branch
      %453 = sbr.rel (0) target = $region49
    $region48: #{decoder_forward.1} parent=1 // pred_region
      _
    $region49: #{decoder_forward.1} parent=1 // pred_fallthru
      _
    %454 = vsyncpa [#allocation3], 1
    %455 = vsyncpa [#allocation5], 1
    %456 = vsyncpa [#allocation8], 1

</llo_original>
